<compile_context>
chip_gen: v7x
topology: tpu7x:2x2x1
jax: 0.10.0
libtpu: 0.0.40
codegen_flags: <defaults>
</compile_context>

<pallas_src>
import math
from functools import partial

import jax
import jax.numpy as jnp
import numpy as np
from jax.experimental import pallas as pl
from jax.experimental.pallas import tpu as pltpu

EPS = 1e-6
NEG_INF = -1e30
# EUP approximate reciprocal frees the VALU but costs ~1e-3-level relative precision.
# Set to False to recover <1e-4 agreement with the pure-JAX reference.
APPROX_RECIPROCAL = True


def _layernorm_unbiased(x, alpha, bias):
    """alpha * (x - mean) / (std_unbiased + EPS) + bias, division replaced by EUP reciprocal."""
    d = x.shape[-1]
    mean = jnp.mean(x, axis=-1, keepdims=True)
    xc = x - mean
    var_unbiased = jnp.sum(xc * xc, axis=-1, keepdims=True) * (1.0 / (d - 1))
    inv_std = pl.reciprocal(jnp.sqrt(var_unbiased) + EPS, approx=APPROX_RECIPROCAL)
    return xc * (alpha * inv_std) + bias


def _block_kernel(q_ref, k_ref, v_ref, seg_bias_ref,
                  a1_ref, b1_ref, a2_ref, b2_ref,
                  w1_ref, wb1_ref, w2_ref, wb2_ref,
                  out_ref, *, d_k):
    # Everything lives in VMEM as full (B*S, ...) slabs — single kernel invocation.
    q = q_ref[...].astype(jnp.float32)          # (N, D)
    k = k_ref[...].astype(jnp.float32)
    v = v_ref[...].astype(jnp.float32)

    a1 = a1_ref[...].astype(jnp.float32)        # (1, D)
    b1 = b1_ref[...].astype(jnp.float32)
    a2 = a2_ref[...].astype(jnp.float32)
    b2 = b2_ref[...].astype(jnp.float32)

    inv_sqrt_dk = 1.0 / math.sqrt(d_k)

    # --- Norm1 on q, k, v ---
    q2 = _layernorm_unbiased(q, a1, b1)
    k2 = _layernorm_unbiased(k, a1, b1)
    v2 = _layernorm_unbiased(v, a1, b1)

    # --- attention on the flattened (B*S, D) problem ---
    # NT matmul: contract the last dims of both operands; no materialized k2.T.
    scores = jax.lax.dot_general(
        q2, k2,
        dimension_numbers=(((1,), (1,)), ((), ())),
        preferred_element_type=jnp.float32) * inv_sqrt_dk          # (N, N)
    # Additive block-diagonal bias (0 within a batch, -1e30 across batches) makes the
    # flattened softmax exactly equal to per-batch softmax (cross-batch probs underflow to 0).
    scores = scores + seg_bias_ref[...]
    scores = scores - jnp.max(scores, axis=-1, keepdims=True)
    p = jnp.exp(scores)
    p = p * pl.reciprocal(jnp.sum(p, axis=-1, keepdims=True), approx=APPROX_RECIPROCAL)
    attn = jnp.dot(p, v2, preferred_element_type=jnp.float32)      # (N, D)

    # residual 1 (dropout is identity in eval mode)
    x = q + attn

    # --- Norm2 + feedforward ---
    x2 = _layernorm_unbiased(x, a2, b2)
    h = jnp.dot(x2, w1_ref[...].astype(jnp.float32),
                preferred_element_type=jnp.float32) + wb1_ref[...].astype(jnp.float32)  # (N, d_l)
    h = jnp.maximum(h, 0.0)
    ff = jnp.dot(h, w2_ref[...].astype(jnp.float32),
                 preferred_element_type=jnp.float32) + wb2_ref[...].astype(jnp.float32)  # (N, D)

    # residual 2 (dropout is identity in eval mode)
    out_ref[...] = (x + ff).astype(out_ref.dtype)


def _full_spec(shape):
    nd = len(shape)
    return pl.BlockSpec(shape, lambda i, _nd=nd: (0,) * _nd)


def transformer_block(q, k, v, params):
    """q, k, v: (B, S, d_k). Returns (B, S, d_k)."""
    B, S, D = q.shape
    N = B * S
    d_l = params["w1"].shape[1]

    # Fold batch into the row (sublane) dimension; reshapes outside the kernel are free.
    qf = q.reshape(N, D)
    kf = k.reshape(N, D)
    vf = v.reshape(N, D)

    # Segment (per-batch) additive attention bias, precomputed host-side.
    seg = jnp.repeat(jnp.arange(B, dtype=jnp.int32), S)
    seg_bias = jnp.where(seg[:, None] == seg[None, :], 0.0, NEG_INF).astype(jnp.float32)

    flops = (4 * N * N * D          # scores + attn@v
             + 4 * N * D * d_l      # two FFN matmuls
             + 40 * N * D + 4 * N * N)
    transcendentals = N * N + 9 * N
    bytes_accessed = 4 * (4 * N * D + N * N + 2 * D * d_l + 2 * d_l + 6 * D)

    out2d = pl.pallas_call(
        partial(_block_kernel, d_k=D),
        out_shape=jax.ShapeDtypeStruct((N, D), q.dtype),
        grid=(1,),
        in_specs=[
            _full_spec((N, D)), _full_spec((N, D)), _full_spec((N, D)),   # q, k, v
            _full_spec((N, N)),                                           # segment bias
            _full_spec((1, D)), _full_spec((1, D)),                       # norm1 alpha, bias
            _full_spec((1, D)), _full_spec((1, D)),                       # norm2 alpha, bias
            _full_spec((D, d_l)), _full_spec((1, d_l)),                   # linear1 W, b
            _full_spec((d_l, D)), _full_spec((1, D)),                     # linear2 W, b
        ],
        out_specs=_full_spec((N, D)),
        compiler_params=pltpu.CompilerParams(
            dimension_semantics=("arbitrary",)),
        cost_estimate=pl.CostEstimate(
            flops=flops,
            transcendentals=transcendentals,
            bytes_accessed=bytes_accessed),
    )(qf, kf, vf, seg_bias,
      params["n1_alpha"], params["n1_bias"],
      params["n2_alpha"], params["n2_bias"],
      params["w1"], params["b1"],
      params["w2"], params["b2"])

    return out2d.reshape(B, S, D)


def _reference(q, k, v, params):
    """Pure-JAX reference with identical (exact-math) semantics, for verification."""
    def norm(x, a, b):
        d = x.shape[-1]
        mean = jnp.mean(x, axis=-1, keepdims=True)
        xc = x - mean
        std = jnp.sqrt(jnp.sum(xc * xc, axis=-1, keepdims=True) / (d - 1))
        return a * xc / (std + EPS) + b

    a1, b1 = params["n1_alpha"], params["n1_bias"]
    a2, b2 = params["n2_alpha"], params["n2_bias"]
    q2, k2, v2 = norm(q, a1, b1), norm(k, a1, b1), norm(v, a1, b1)
    d_k = q.shape[-1]
    s = jnp.einsum("bqd,bkd->bqk", q2, k2) / math.sqrt(d_k)
    p = jax.nn.softmax(s, axis=-1)
    q = q + jnp.einsum("bqk,bkd->bqd", p, v2)
    q2 = norm(q, a2, b2)
    h = jnp.maximum(q2 @ params["w1"] + params["b1"], 0.0)
    return q + (h @ params["w2"] + params["b2"])


if __name__ == "__main__":
    B, S, d_k, d_l = 2, 8, 32, 128

    key = jax.random.PRNGKey(0)
    kq, kk, kv, kw1, kb1, kw2, kb2 = jax.random.split(key, 7)

    q = jax.random.normal(kq, (B, S, d_k), dtype=jnp.float32)
    k = jax.random.normal(kk, (B, S, d_k), dtype=jnp.float32)
    v = jax.random.normal(kv, (B, S, d_k), dtype=jnp.float32)

    params = {
        # Norm params: PyTorch init is alpha=ones, bias=zeros
        "n1_alpha": jnp.ones((1, d_k), jnp.float32),
        "n1_bias": jnp.zeros((1, d_k), jnp.float32),
        "n2_alpha": jnp.ones((1, d_k), jnp.float32),
        "n2_bias": jnp.zeros((1, d_k), jnp.float32),
        # Feedforward weights (deterministic synthetic init; stored as (in, out))
        "w1": (jax.random.normal(kw1, (d_k, d_l), jnp.float32)
               * (1.0 / math.sqrt(d_k))),
        "b1": jax.random.normal(kb1, (1, d_l), jnp.float32) * 0.01,
        "w2": (jax.random.normal(kw2, (d_l, d_k), jnp.float32)
               * (1.0 / math.sqrt(d_l))),
        "b2": jax.random.normal(kb2, (1, d_k), jnp.float32) * 0.01,
    }

    out = transformer_block(q, k, v, params)
    out = jax.block_until_ready(out)

    ref = _reference(q, k, v, params)
    # Tolerance accounts for the EUP approximate-reciprocal fast path used in the kernel
    # (layernorm inv-std and softmax denominator); with APPROX_RECIPROCAL=False the kernel
    # matches the reference to ~1e-4.
    tol = 1e-2 if APPROX_RECIPROCAL else 1e-4
    np.testing.assert_allclose(np.asarray(out), np.asarray(ref), rtol=tol, atol=tol)

    print("KERNEL_OK")
</pallas_src>

<mosaic_0001>
module attributes {stable_mosaic.version = 11 : i64} {
  func.func @_block_kernel(%arg0: i32, %arg1: memref<16x32xf32, #tpu.memory_space<vmem>>, %arg2: memref<16x32xf32, #tpu.memory_space<vmem>>, %arg3: memref<16x32xf32, #tpu.memory_space<vmem>>, %arg4: memref<16x16xf32, #tpu.memory_space<vmem>>, %arg5: memref<1x32xf32, #tpu.memory_space<vmem>>, %arg6: memref<1x32xf32, #tpu.memory_space<vmem>>, %arg7: memref<1x32xf32, #tpu.memory_space<vmem>>, %arg8: memref<1x32xf32, #tpu.memory_space<vmem>>, %arg9: memref<32x128xf32, #tpu.memory_space<vmem>>, %arg10: memref<1x128xf32, #tpu.memory_space<vmem>>, %arg11: memref<128x32xf32, #tpu.memory_space<vmem>>, %arg12: memref<1x32xf32, #tpu.memory_space<vmem>>, %arg13: memref<16x32xf32, #tpu.memory_space<vmem>>) attributes {dimension_semantics = [#tpu.dimension_semantics<arbitrary>], iteration_bounds = array<i64: 1>, scalar_prefetch = 0 : i64, scratch_operands = 0 : i64, tpu.core_type = #tpu.core_type<tc>, window_params = [{pipeline_mode = #tpu.pipeline_mode<synchronous>, transform_indices = @transform_0, window_bounds = array<i64: 16, 32>}, {pipeline_mode = #tpu.pipeline_mode<synchronous>, transform_indices = @transform_1, window_bounds = array<i64: 16, 32>}, {pipeline_mode = #tpu.pipeline_mode<synchronous>, transform_indices = @transform_2, window_bounds = array<i64: 16, 32>}, {pipeline_mode = #tpu.pipeline_mode<synchronous>, transform_indices = @transform_3, window_bounds = array<i64: 16, 16>}, {pipeline_mode = #tpu.pipeline_mode<synchronous>, transform_indices = @transform_4, window_bounds = array<i64: 1, 32>}, {pipeline_mode = #tpu.pipeline_mode<synchronous>, transform_indices = @transform_5, window_bounds = array<i64: 1, 32>}, {pipeline_mode = #tpu.pipeline_mode<synchronous>, transform_indices = @transform_6, window_bounds = array<i64: 1, 32>}, {pipeline_mode = #tpu.pipeline_mode<synchronous>, transform_indices = @transform_7, window_bounds = array<i64: 1, 32>}, {pipeline_mode = #tpu.pipeline_mode<synchronous>, transform_indices = @transform_8, window_bounds = array<i64: 32, 128>}, {pipeline_mode = #tpu.pipeline_mode<synchronous>, transform_indices = @transform_9, window_bounds = array<i64: 1, 128>}, {pipeline_mode = #tpu.pipeline_mode<synchronous>, transform_indices = @transform_10, window_bounds = array<i64: 128, 32>}, {pipeline_mode = #tpu.pipeline_mode<synchronous>, transform_indices = @transform_11, window_bounds = array<i64: 1, 32>}, {pipeline_mode = #tpu.pipeline_mode<synchronous>, transform_indices = @transform_12, window_bounds = array<i64: 16, 32>}]} {
    %c0 = arith.constant 0 : index
    %c0_0 = arith.constant 0 : index
    %0 = vector.load %arg1[%c0, %c0_0] : memref<16x32xf32, #tpu.memory_space<vmem>>, vector<16x32xf32>
    %c0_1 = arith.constant 0 : index
    %c0_2 = arith.constant 0 : index
    %1 = vector.load %arg2[%c0_1, %c0_2] : memref<16x32xf32, #tpu.memory_space<vmem>>, vector<16x32xf32>
    %c0_3 = arith.constant 0 : index
    %c0_4 = arith.constant 0 : index
    %2 = vector.load %arg3[%c0_3, %c0_4] : memref<16x32xf32, #tpu.memory_space<vmem>>, vector<16x32xf32>
    %c0_5 = arith.constant 0 : index
    %c0_6 = arith.constant 0 : index
    %3 = vector.load %arg5[%c0_5, %c0_6] : memref<1x32xf32, #tpu.memory_space<vmem>>, vector<1x32xf32>
    %c0_7 = arith.constant 0 : index
    %c0_8 = arith.constant 0 : index
    %4 = vector.load %arg6[%c0_7, %c0_8] : memref<1x32xf32, #tpu.memory_space<vmem>>, vector<1x32xf32>
    %c0_9 = arith.constant 0 : index
    %c0_10 = arith.constant 0 : index
    %5 = vector.load %arg7[%c0_9, %c0_10] : memref<1x32xf32, #tpu.memory_space<vmem>>, vector<1x32xf32>
    %c0_11 = arith.constant 0 : index
    %c0_12 = arith.constant 0 : index
    %6 = vector.load %arg8[%c0_11, %c0_12] : memref<1x32xf32, #tpu.memory_space<vmem>>, vector<1x32xf32>
    %cst = arith.constant dense<0.000000e+00> : vector<16xf32>
    %7 = vector.multi_reduction <add>, %0, %cst [1] : vector<16x32xf32> to vector<16xf32>
    %8 = vector.shape_cast %7 : vector<16xf32> to vector<16x1xf32>
    %cst_13 = arith.constant 3.200000e+01 : f32
    %9 = vector.broadcast %cst_13 : f32 to vector<16x1xf32>
    %10 = arith.divf %8, %9 : vector<16x1xf32>
    %11 = vector.broadcast %10 : vector<16x1xf32> to vector<16x32xf32>
    %12 = arith.subf %0, %11 : vector<16x32xf32>
    %13 = arith.mulf %12, %12 : vector<16x32xf32>
    %cst_14 = arith.constant dense<0.000000e+00> : vector<16xf32>
    %14 = vector.multi_reduction <add>, %13, %cst_14 [1] : vector<16x32xf32> to vector<16xf32>
    %15 = vector.shape_cast %14 : vector<16xf32> to vector<16x1xf32>
    %cst_15 = arith.constant 0.0322580636 : f32
    %16 = vector.broadcast %cst_15 : f32 to vector<16x1xf32>
    %17 = arith.mulf %15, %16 : vector<16x1xf32>
    %18 = math.sqrt %17 : vector<16x1xf32>
    %cst_16 = arith.constant 9.99999997E-7 : f32
    %19 = vector.broadcast %cst_16 : f32 to vector<16x1xf32>
    %20 = arith.addf %18, %19 : vector<16x1xf32>
    %21 = tpu.reciprocal %20 {approx = true} : vector<16x1xf32> -> vector<16x1xf32>
    %22 = vector.broadcast %3 : vector<1x32xf32> to vector<16x32xf32>
    %23 = vector.broadcast %21 : vector<16x1xf32> to vector<16x32xf32>
    %24 = arith.mulf %22, %23 : vector<16x32xf32>
    %25 = arith.mulf %12, %24 : vector<16x32xf32>
    %26 = vector.broadcast %4 : vector<1x32xf32> to vector<16x32xf32>
    %27 = arith.addf %25, %26 : vector<16x32xf32>
    %cst_17 = arith.constant dense<0.000000e+00> : vector<16xf32>
    %28 = vector.multi_reduction <add>, %1, %cst_17 [1] : vector<16x32xf32> to vector<16xf32>
    %29 = vector.shape_cast %28 : vector<16xf32> to vector<16x1xf32>
    %cst_18 = arith.constant 3.200000e+01 : f32
    %30 = vector.broadcast %cst_18 : f32 to vector<16x1xf32>
    %31 = arith.divf %29, %30 : vector<16x1xf32>
    %32 = vector.broadcast %31 : vector<16x1xf32> to vector<16x32xf32>
    %33 = arith.subf %1, %32 : vector<16x32xf32>
    %34 = arith.mulf %33, %33 : vector<16x32xf32>
    %cst_19 = arith.constant dense<0.000000e+00> : vector<16xf32>
    %35 = vector.multi_reduction <add>, %34, %cst_19 [1] : vector<16x32xf32> to vector<16xf32>
    %36 = vector.shape_cast %35 : vector<16xf32> to vector<16x1xf32>
    %cst_20 = arith.constant 0.0322580636 : f32
    %37 = vector.broadcast %cst_20 : f32 to vector<16x1xf32>
    %38 = arith.mulf %36, %37 : vector<16x1xf32>
    %39 = math.sqrt %38 : vector<16x1xf32>
    %cst_21 = arith.constant 9.99999997E-7 : f32
    %40 = vector.broadcast %cst_21 : f32 to vector<16x1xf32>
    %41 = arith.addf %39, %40 : vector<16x1xf32>
    %42 = tpu.reciprocal %41 {approx = true} : vector<16x1xf32> -> vector<16x1xf32>
    %43 = vector.broadcast %3 : vector<1x32xf32> to vector<16x32xf32>
    %44 = vector.broadcast %42 : vector<16x1xf32> to vector<16x32xf32>
    %45 = arith.mulf %43, %44 : vector<16x32xf32>
    %46 = arith.mulf %33, %45 : vector<16x32xf32>
    %47 = vector.broadcast %4 : vector<1x32xf32> to vector<16x32xf32>
    %48 = arith.addf %46, %47 : vector<16x32xf32>
    %cst_22 = arith.constant dense<0.000000e+00> : vector<16xf32>
    %49 = vector.multi_reduction <add>, %2, %cst_22 [1] : vector<16x32xf32> to vector<16xf32>
    %50 = vector.shape_cast %49 : vector<16xf32> to vector<16x1xf32>
    %cst_23 = arith.constant 3.200000e+01 : f32
    %51 = vector.broadcast %cst_23 : f32 to vector<16x1xf32>
    %52 = arith.divf %50, %51 : vector<16x1xf32>
    %53 = vector.broadcast %52 : vector<16x1xf32> to vector<16x32xf32>
    %54 = arith.subf %2, %53 : vector<16x32xf32>
    %55 = arith.mulf %54, %54 : vector<16x32xf32>
    %cst_24 = arith.constant dense<0.000000e+00> : vector<16xf32>
    %56 = vector.multi_reduction <add>, %55, %cst_24 [1] : vector<16x32xf32> to vector<16xf32>
    %57 = vector.shape_cast %56 : vector<16xf32> to vector<16x1xf32>
    %cst_25 = arith.constant 0.0322580636 : f32
    %58 = vector.broadcast %cst_25 : f32 to vector<16x1xf32>
    %59 = arith.mulf %57, %58 : vector<16x1xf32>
    %60 = math.sqrt %59 : vector<16x1xf32>
    %cst_26 = arith.constant 9.99999997E-7 : f32
    %61 = vector.broadcast %cst_26 : f32 to vector<16x1xf32>
    %62 = arith.addf %60, %61 : vector<16x1xf32>
    %63 = tpu.reciprocal %62 {approx = true} : vector<16x1xf32> -> vector<16x1xf32>
    %64 = vector.broadcast %3 : vector<1x32xf32> to vector<16x32xf32>
    %65 = vector.broadcast %63 : vector<16x1xf32> to vector<16x32xf32>
    %66 = arith.mulf %64, %65 : vector<16x32xf32>
    %67 = arith.mulf %54, %66 : vector<16x32xf32>
    %68 = vector.broadcast %4 : vector<1x32xf32> to vector<16x32xf32>
    %69 = arith.addf %67, %68 : vector<16x32xf32>
    %cst_27 = arith.constant dense<0.000000e+00> : vector<16x16xf32>
    %70 = tpu.matmul %27, %48, %cst_27 {dimension_numbers = #tpu.dot_dimension_numbers<[1], [1], [0], [0], [0, 0, 1, 0], [], []>} : vector<16x32xf32>, vector<16x32xf32>, vector<16x16xf32> -> vector<16x16xf32>
    %cst_28 = arith.constant 0.176776692 : f32
    %71 = vector.broadcast %cst_28 : f32 to vector<16x16xf32>
    %72 = arith.mulf %70, %71 : vector<16x16xf32>
    %c0_29 = arith.constant 0 : index
    %c0_30 = arith.constant 0 : index
    %73 = vector.load %arg4[%c0_29, %c0_30] : memref<16x16xf32, #tpu.memory_space<vmem>>, vector<16x16xf32>
    %74 = arith.addf %72, %73 : vector<16x16xf32>
    %cst_31 = arith.constant dense<0xFF800000> : vector<16xf32>
    %75 = vector.multi_reduction <maximumf>, %74, %cst_31 [1] : vector<16x16xf32> to vector<16xf32>
    %76 = vector.shape_cast %75 : vector<16xf32> to vector<16x1xf32>
    %77 = vector.broadcast %76 : vector<16x1xf32> to vector<16x16xf32>
    %78 = arith.subf %74, %77 : vector<16x16xf32>
    %79 = math.exp %78 : vector<16x16xf32>
    %cst_32 = arith.constant dense<0.000000e+00> : vector<16xf32>
    %80 = vector.multi_reduction <add>, %79, %cst_32 [1] : vector<16x16xf32> to vector<16xf32>
    %81 = vector.shape_cast %80 : vector<16xf32> to vector<16x1xf32>
    %82 = tpu.reciprocal %81 {approx = true} : vector<16x1xf32> -> vector<16x1xf32>
    %83 = vector.broadcast %82 : vector<16x1xf32> to vector<16x16xf32>
    %84 = arith.mulf %79, %83 : vector<16x16xf32>
    %cst_33 = arith.constant dense<0.000000e+00> : vector<16x32xf32>
    %85 = tpu.matmul %84, %69, %cst_33 {dimension_numbers = #tpu.dot_dimension_numbers<[1], [0], [0], [1], [0, 0, 1, 1], [], []>} : vector<16x16xf32>, vector<16x32xf32>, vector<16x32xf32> -> vector<16x32xf32>
    %86 = arith.addf %0, %85 : vector<16x32xf32>
    %cst_34 = arith.constant dense<0.000000e+00> : vector<16xf32>
    %87 = vector.multi_reduction <add>, %86, %cst_34 [1] : vector<16x32xf32> to vector<16xf32>
    %88 = vector.shape_cast %87 : vector<16xf32> to vector<16x1xf32>
    %cst_35 = arith.constant 3.200000e+01 : f32
    %89 = vector.broadcast %cst_35 : f32 to vector<16x1xf32>
    %90 = arith.divf %88, %89 : vector<16x1xf32>
    %91 = vector.broadcast %90 : vector<16x1xf32> to vector<16x32xf32>
    %92 = arith.subf %86, %91 : vector<16x32xf32>
    %93 = arith.mulf %92, %92 : vector<16x32xf32>
    %cst_36 = arith.constant dense<0.000000e+00> : vector<16xf32>
    %94 = vector.multi_reduction <add>, %93, %cst_36 [1] : vector<16x32xf32> to vector<16xf32>
    %95 = vector.shape_cast %94 : vector<16xf32> to vector<16x1xf32>
    %cst_37 = arith.constant 0.0322580636 : f32
    %96 = vector.broadcast %cst_37 : f32 to vector<16x1xf32>
    %97 = arith.mulf %95, %96 : vector<16x1xf32>
    %98 = math.sqrt %97 : vector<16x1xf32>
    %cst_38 = arith.constant 9.99999997E-7 : f32
    %99 = vector.broadcast %cst_38 : f32 to vector<16x1xf32>
    %100 = arith.addf %98, %99 : vector<16x1xf32>
    %101 = tpu.reciprocal %100 {approx = true} : vector<16x1xf32> -> vector<16x1xf32>
    %102 = vector.broadcast %5 : vector<1x32xf32> to vector<16x32xf32>
    %103 = vector.broadcast %101 : vector<16x1xf32> to vector<16x32xf32>
    %104 = arith.mulf %102, %103 : vector<16x32xf32>
    %105 = arith.mulf %92, %104 : vector<16x32xf32>
    %106 = vector.broadcast %6 : vector<1x32xf32> to vector<16x32xf32>
    %107 = arith.addf %105, %106 : vector<16x32xf32>
    %c0_39 = arith.constant 0 : index
    %c0_40 = arith.constant 0 : index
    %108 = vector.load %arg9[%c0_39, %c0_40] : memref<32x128xf32, #tpu.memory_space<vmem>>, vector<32x128xf32>
    %cst_41 = arith.constant dense<0.000000e+00> : vector<16x128xf32>
    %109 = tpu.matmul %107, %108, %cst_41 {dimension_numbers = #tpu.dot_dimension_numbers<[1], [0], [0], [1], [0, 0, 1, 1], [], []>} : vector<16x32xf32>, vector<32x128xf32>, vector<16x128xf32> -> vector<16x128xf32>
    %c0_42 = arith.constant 0 : index
    %c0_43 = arith.constant 0 : index
    %110 = vector.load %arg10[%c0_42, %c0_43] : memref<1x128xf32, #tpu.memory_space<vmem>>, vector<1x128xf32>
    %111 = vector.broadcast %110 : vector<1x128xf32> to vector<16x128xf32>
    %112 = arith.addf %109, %111 : vector<16x128xf32>
    %cst_44 = arith.constant 0.000000e+00 : f32
    %113 = vector.broadcast %cst_44 : f32 to vector<16x128xf32>
    %114 = arith.maximumf %112, %113 : vector<16x128xf32>
    %c0_45 = arith.constant 0 : index
    %c0_46 = arith.constant 0 : index
    %115 = vector.load %arg11[%c0_45, %c0_46] : memref<128x32xf32, #tpu.memory_space<vmem>>, vector<128x32xf32>
    %cst_47 = arith.constant dense<0.000000e+00> : vector<16x32xf32>
    %116 = tpu.matmul %114, %115, %cst_47 {dimension_numbers = #tpu.dot_dimension_numbers<[1], [0], [0], [1], [0, 0, 1, 1], [], []>} : vector<16x128xf32>, vector<128x32xf32>, vector<16x32xf32> -> vector<16x32xf32>
    %c0_48 = arith.constant 0 : index
    %c0_49 = arith.constant 0 : index
    %117 = vector.load %arg12[%c0_48, %c0_49] : memref<1x32xf32, #tpu.memory_space<vmem>>, vector<1x32xf32>
    %118 = vector.broadcast %117 : vector<1x32xf32> to vector<16x32xf32>
    %119 = arith.addf %116, %118 : vector<16x32xf32>
    %120 = arith.addf %86, %119 : vector<16x32xf32>
    %c0_50 = arith.constant 0 : index
    %c0_51 = arith.constant 0 : index
    %121 = vector.load %arg13[%c0_50, %c0_51] : memref<16x32xf32, #tpu.memory_space<vmem>>, vector<16x32xf32>
    tpu.vector_store %arg13[%c0_50, %c0_51], %120 {strides = array<i32>} : memref<16x32xf32, #tpu.memory_space<vmem>>, vector<16x32xf32>,
    return
  }
  func.func @transform_0(%arg0: i32) -> (i32, i32) {
    %c0_i32 = arith.constant 0 : i32
    %c0_i32_0 = arith.constant 0 : i32
    %c0_i32_1 = arith.constant 0 : i32
    return %c0_i32, %c0_i32_0 : i32, i32
  }
  func.func @transform_1(%arg0: i32) -> (i32, i32) {
    %c0_i32 = arith.constant 0 : i32
    %c0_i32_0 = arith.constant 0 : i32
    %c0_i32_1 = arith.constant 0 : i32
    return %c0_i32, %c0_i32_0 : i32, i32
  }
  func.func @transform_2(%arg0: i32) -> (i32, i32) {
    %c0_i32 = arith.constant 0 : i32
    %c0_i32_0 = arith.constant 0 : i32
    %c0_i32_1 = arith.constant 0 : i32
    return %c0_i32, %c0_i32_0 : i32, i32
  }
  func.func @transform_3(%arg0: i32) -> (i32, i32) {
    %c0_i32 = arith.constant 0 : i32
    %c0_i32_0 = arith.constant 0 : i32
    %c0_i32_1 = arith.constant 0 : i32
    return %c0_i32, %c0_i32_0 : i32, i32
  }
  func.func @transform_4(%arg0: i32) -> (i32, i32) {
    %c0_i32 = arith.constant 0 : i32
    %c0_i32_0 = arith.constant 0 : i32
    %c0_i32_1 = arith.constant 0 : i32
    return %c0_i32, %c0_i32_0 : i32, i32
  }
  func.func @transform_5(%arg0: i32) -> (i32, i32) {
    %c0_i32 = arith.constant 0 : i32
    %c0_i32_0 = arith.constant 0 : i32
    %c0_i32_1 = arith.constant 0 : i32
    return %c0_i32, %c0_i32_0 : i32, i32
  }
  func.func @transform_6(%arg0: i32) -> (i32, i32) {
    %c0_i32 = arith.constant 0 : i32
    %c0_i32_0 = arith.constant 0 : i32
    %c0_i32_1 = arith.constant 0 : i32
    return %c0_i32, %c0_i32_0 : i32, i32
  }
  func.func @transform_7(%arg0: i32) -> (i32, i32) {
    %c0_i32 = arith.constant 0 : i32
    %c0_i32_0 = arith.constant 0 : i32
    %c0_i32_1 = arith.constant 0 : i32
    return %c0_i32, %c0_i32_0 : i32, i32
  }
  func.func @transform_8(%arg0: i32) -> (i32, i32) {
    %c0_i32 = arith.constant 0 : i32
    %c0_i32_0 = arith.constant 0 : i32
    %c0_i32_1 = arith.constant 0 : i32
    return %c0_i32, %c0_i32_0 : i32, i32
  }
  func.func @transform_9(%arg0: i32) -> (i32, i32) {
    %c0_i32 = arith.constant 0 : i32
    %c0_i32_0 = arith.constant 0 : i32
    %c0_i32_1 = arith.constant 0 : i32
    return %c0_i32, %c0_i32_0 : i32, i32
  }
  func.func @transform_10(%arg0: i32) -> (i32, i32) {
    %c0_i32 = arith.constant 0 : i32
    %c0_i32_0 = arith.constant 0 : i32
    %c0_i32_1 = arith.constant 0 : i32
    return %c0_i32, %c0_i32_0 : i32, i32
  }
  func.func @transform_11(%arg0: i32) -> (i32, i32) {
    %c0_i32 = arith.constant 0 : i32
    %c0_i32_0 = arith.constant 0 : i32
    %c0_i32_1 = arith.constant 0 : i32
    return %c0_i32, %c0_i32_0 : i32, i32
  }
  func.func @transform_12(%arg0: i32) -> (i32, i32) {
    %c0_i32 = arith.constant 0 : i32
    %c0_i32_0 = arith.constant 0 : i32
    %c0_i32_1 = arith.constant 0 : i32
    return %c0_i32, %c0_i32_0 : i32, i32
  }
}

</mosaic_0001>

<llo_original>
// kernel: tpu_custom_call.1
$region0: #{tpu_custom_call.1}
  #allocation0 [shape = 'u32[]', space=smem, size = 0x4, offset = 0x4, fixed_abs, tag = 'smem constant byte address 0x4 - core index']
  #allocation1 [shape = 'u32[144,128]{1,0:T(1,128)}', space=vmem, size = 0x12000, scoped, tag = 'internal scratch']
  %s0 = inlined_call_operand.vmem [shape: f32[16,32], index: 0, kind: input, shape index: {}]
  %s1 = inlined_call_operand.vmem [shape: f32[16,32], index: 1, kind: input, shape index: {}]
  %s2 = inlined_call_operand.vmem [shape: f32[16,32], index: 2, kind: input, shape index: {}]
  %s3 = inlined_call_operand.vmem [shape: f32[16,16], index: 3, kind: input, shape index: {}]
  %s4 = inlined_call_operand.vmem [shape: f32[1,32], index: 4, kind: input, shape index: {}]
  %s5 = inlined_call_operand.vmem [shape: f32[1,32], index: 5, kind: input, shape index: {}]
  %s6 = inlined_call_operand.vmem [shape: f32[1,32], index: 6, kind: input, shape index: {}]
  %s7 = inlined_call_operand.vmem [shape: f32[1,32], index: 7, kind: input, shape index: {}]
  %s8 = inlined_call_operand.vmem [shape: f32[32,128], index: 8, kind: input, shape index: {}]
  %s9 = inlined_call_operand.vmem [shape: f32[1,128], index: 9, kind: input, shape index: {}]
  %s10 = inlined_call_operand.vmem [shape: f32[128,32], index: 10, kind: input, shape index: {}]
  %s11 = inlined_call_operand.vmem [shape: f32[1,32], index: 11, kind: input, shape index: {}]
  %s12 = inlined_call_operand.hbm [shape: f32[16,32], index: 12, kind: output, shape index: {}]
  %s13 = sld [smem:[#allocation0]]
  $region58: #{tpu_custom_call.1} parent=0
    _
  %s15 = ssub.s32 1, %s13
  %s16 = scalar_select 0, %s15, %s13
  $region1: #{tpu_custom_call.1} parent=0
    #allocation2 [shape = 'u8[8192]{0}', space=vmem, size = 0x2000, scoped, tag = 'output window, operand 0, single buffered']
    #allocation3 [shape = 's32[1]{0}', space=sflag, size = 0x4, scoped, tag = 'scoped memory for tpu_custom_call.1']
    %17 = vsyncpa [#allocation3], 0
    // Predicated region
    $region2: #{tpu_custom_call.1} parent=1 // pred_check
      _
    $region3: #{tpu_custom_call.1} parent=1 // pred_check_branch
      %19 = sbr.rel (0) target = $region5
    $region4: #{tpu_custom_call.1} parent=1 // pred_region
      _
    $region5: #{tpu_custom_call.1} parent=1 // pred_fallthru
      _
    // Predicated region
    $region6: #{tpu_custom_call.1} parent=1 // pred_check
      _
    $region7: #{tpu_custom_call.1} parent=1 // pred_check_branch
      %21 = sbr.rel (0) target = $region9
    $region8: #{tpu_custom_call.1} parent=1 // pred_region
      _
    $region9: #{tpu_custom_call.1} parent=1 // pred_fallthru
      _
    // Predicated region
    $region10: #{tpu_custom_call.1} parent=1 // pred_check
      _
    $region11: #{tpu_custom_call.1} parent=1 // pred_check_branch
      %23 = sbr.rel (0) target = $region13
    $region12: #{tpu_custom_call.1} parent=1 // pred_region
      _
    $region13: #{tpu_custom_call.1} parent=1 // pred_fallthru
      _
    // Predicated region
    $region14: #{tpu_custom_call.1} parent=1 // pred_check
      _
    $region15: #{tpu_custom_call.1} parent=1 // pred_check_branch
      %25 = sbr.rel (0) target = $region17
    $region16: #{tpu_custom_call.1} parent=1 // pred_region
      _
    $region17: #{tpu_custom_call.1} parent=1 // pred_fallthru
      _
    // Predicated region
    $region18: #{tpu_custom_call.1} parent=1 // pred_check
      _
    $region19: #{tpu_custom_call.1} parent=1 // pred_check_branch
      %27 = sbr.rel (0) target = $region21
    $region20: #{tpu_custom_call.1} parent=1 // pred_region
      _
    $region21: #{tpu_custom_call.1} parent=1 // pred_fallthru
      _
    // Predicated region
    $region22: #{tpu_custom_call.1} parent=1 // pred_check
      _
    $region23: #{tpu_custom_call.1} parent=1 // pred_check_branch
      %29 = sbr.rel (0) target = $region25
    $region24: #{tpu_custom_call.1} parent=1 // pred_region
      _
    $region25: #{tpu_custom_call.1} parent=1 // pred_fallthru
      _
    // Predicated region
    $region26: #{tpu_custom_call.1} parent=1 // pred_check
      _
    $region27: #{tpu_custom_call.1} parent=1 // pred_check_branch
      %31 = sbr.rel (0) target = $region29
    $region28: #{tpu_custom_call.1} parent=1 // pred_region
      _
    $region29: #{tpu_custom_call.1} parent=1 // pred_fallthru
      _
    // Predicated region
    $region30: #{tpu_custom_call.1} parent=1 // pred_check
      _
    $region31: #{tpu_custom_call.1} parent=1 // pred_check_branch
      %33 = sbr.rel (0) target = $region33
    $region32: #{tpu_custom_call.1} parent=1 // pred_region
      _
    $region33: #{tpu_custom_call.1} parent=1 // pred_fallthru
      _
    // Predicated region
    $region34: #{tpu_custom_call.1} parent=1 // pred_check
      _
    $region35: #{tpu_custom_call.1} parent=1 // pred_check_branch
      %35 = sbr.rel (0) target = $region37
    $region36: #{tpu_custom_call.1} parent=1 // pred_region
      _
    $region37: #{tpu_custom_call.1} parent=1 // pred_fallthru
      _
    // Predicated region
    $region38: #{tpu_custom_call.1} parent=1 // pred_check
      _
    $region39: #{tpu_custom_call.1} parent=1 // pred_check_branch
      %37 = sbr.rel (0) target = $region41
    $region40: #{tpu_custom_call.1} parent=1 // pred_region
      _
    $region41: #{tpu_custom_call.1} parent=1 // pred_fallthru
      _
    // Predicated region
    $region42: #{tpu_custom_call.1} parent=1 // pred_check
      _
    $region43: #{tpu_custom_call.1} parent=1 // pred_check_branch
      %39 = sbr.rel (0) target = $region45
    $region44: #{tpu_custom_call.1} parent=1 // pred_region
      _
    $region45: #{tpu_custom_call.1} parent=1 // pred_fallthru
      _
    // Predicated region
    $region46: #{tpu_custom_call.1} parent=1 // pred_check
      _
    $region47: #{tpu_custom_call.1} parent=1 // pred_check_branch
      %41 = sbr.rel (0) target = $region49
    $region48: #{tpu_custom_call.1} parent=1 // pred_region
      _
    $region49: #{tpu_custom_call.1} parent=1 // pred_fallthru
      _
    %v42 = vld [vmem:[%s0] sm:$0xff]
    %v43 = vld [vmem:[%s0 + $0x8] sm:$0xff]
    %v44 = vld [vmem:[%s1] sm:$0xff]
    %v45 = vld [vmem:[%s1 + $0x8] sm:$0xff]
    %v46 = vld [vmem:[%s2] sm:$0xff]
    %v47 = vld [vmem:[%s2 + $0x8] sm:$0xff]
    %v48 = vld [vmem:[%s4] sm:$0x1]
    %v49 = vld [vmem:[%s5] sm:$0x1]
    %v50 = vld [vmem:[%s6] sm:$0x1]
    %v51 = vld [vmem:[%s7] sm:$0x1]
    %vm52 = vcmask 261120
    %v53 = vsel %vm52, %v42, 0.0
    %54 = vadd.xlane.f32.xlu0 %v53
    %v55 = vpop.xlane.xlu0 %54
    %v56 = vsel %vm52, %v43, 0.0
    %57 = vadd.xlane.f32.xlu0 %v56
    %v58 = vpop.xlane.xlu0 %57
    %v59 = vrcp.pop 32.0
    %v60 = vmul.f32 %v55, %v59
    %v61 = vmul.f32 %v58, %v59
    %v62 = vsub.f32 %v42, %v60
    %v63 = vsub.f32 %v43, %v61
    %v64 = vmul.f32 %v62, %v62
    %v65 = vmul.f32 %v63, %v63
    %v66 = vsel %vm52, %v64, 0.0
    %67 = vadd.xlane.f32.xlu0 %v66
    %v68 = vpop.xlane.xlu0 %67
    %v69 = vsel %vm52, %v65, 0.0
    %70 = vadd.xlane.f32.xlu0 %v69
    %v71 = vpop.xlane.xlu0 %70
    %v72 = vmul.f32 %v68, 0.032258064
    %v73 = vmul.f32 %v71, 0.032258064
    %v74 = vrsqrt.pop %v72
    %v75 = vmul.f32 %v72, %v74
    %vm76 = vcmp.eq.f32.partialorder %v72, inf
    %v77 = vsel %vm76, %v72, %v75
    %vm78 = vcmp.eq.f32.partialorder %v72, 0.0
    %v79 = vand.u32 %v72, 2147483648
    %v80 = vsel %vm78, %v79, %v77
    %v81 = vrsqrt.pop %v73
    %v82 = vmul.f32 %v73, %v81
    %vm83 = vcmp.eq.f32.partialorder %v73, inf
    %v84 = vsel %vm83, %v73, %v82
    %vm85 = vcmp.eq.f32.partialorder %v73, 0.0
    %v86 = vand.u32 %v73, 2147483648
    %v87 = vsel %vm85, %v86, %v84
    %v88 = vadd.f32 %v80, 1e-06
    %v89 = vadd.f32 %v87, 1e-06
    %v90 = vrcp.pop %v88
    %v91 = vrcp.pop %v89
    %v93 = vlaneseq
    %v94 = vshrl.u32 %v93, 7
    %v95 = vsub.s32 0, %v94
    %v96 = vrot.slane %v48, %v95
    %v98 = vmul.f32 %v96, %v90
    %v99 = vmul.f32 %v96, %v91
    %v100 = vmul.f32 %v62, %v98
    %v101 = vmul.f32 %v63, %v99
    %v103 = vlaneseq
    %v104 = vshrl.u32 %v103, 7
    %v105 = vsub.s32 0, %v104
    %v106 = vrot.slane %v49, %v105
    %v108 = vadd.f32 %v100, %v106
    %v109 = vadd.f32 %v101, %v106
    %v110 = vsel %vm52, %v44, 0.0
    %111 = vadd.xlane.f32.xlu0 %v110
    %v112 = vpop.xlane.xlu0 %111
    %v113 = vsel %vm52, %v45, 0.0
    %114 = vadd.xlane.f32.xlu0 %v113
    %v115 = vpop.xlane.xlu0 %114
    %v116 = vmul.f32 %v112, %v59
    %v117 = vmul.f32 %v115, %v59
    %v118 = vsub.f32 %v44, %v116
    %v119 = vsub.f32 %v45, %v117
    %v120 = vmul.f32 %v118, %v118
    %v121 = vmul.f32 %v119, %v119
    %v122 = vsel %vm52, %v120, 0.0
    %123 = vadd.xlane.f32.xlu0 %v122
    %v124 = vpop.xlane.xlu0 %123
    %v125 = vsel %vm52, %v121, 0.0
    %126 = vadd.xlane.f32.xlu0 %v125
    %v127 = vpop.xlane.xlu0 %126
    %v128 = vmul.f32 %v124, 0.032258064
    %v129 = vmul.f32 %v127, 0.032258064
    %v130 = vrsqrt.pop %v128
    %v131 = vmul.f32 %v128, %v130
    %vm132 = vcmp.eq.f32.partialorder %v128, inf
    %v133 = vsel %vm132, %v128, %v131
    %vm134 = vcmp.eq.f32.partialorder %v128, 0.0
    %v135 = vand.u32 %v128, 2147483648
    %v136 = vsel %vm134, %v135, %v133
    %v137 = vrsqrt.pop %v129
    %v138 = vmul.f32 %v129, %v137
    %vm139 = vcmp.eq.f32.partialorder %v129, inf
    %v140 = vsel %vm139, %v129, %v138
    %vm141 = vcmp.eq.f32.partialorder %v129, 0.0
    %v142 = vand.u32 %v129, 2147483648
    %v143 = vsel %vm141, %v142, %v140
    %v144 = vadd.f32 %v136, 1e-06
    %v145 = vadd.f32 %v143, 1e-06
    %v146 = vrcp.pop %v144
    %v147 = vrcp.pop %v145
    %v148 = vmul.f32 %v96, %v146
    %v149 = vmul.f32 %v96, %v147
    %v150 = vmul.f32 %v118, %v148
    %v151 = vmul.f32 %v119, %v149
    %v152 = vadd.f32 %v150, %v106
    %v153 = vadd.f32 %v151, %v106
    %v154 = vsel %vm52, %v46, 0.0
    %155 = vadd.xlane.f32.xlu0 %v154
    %v156 = vpop.xlane.xlu0 %155
    %v157 = vsel %vm52, %v47, 0.0
    %158 = vadd.xlane.f32.xlu0 %v157
    %v159 = vpop.xlane.xlu0 %158
    %v160 = vmul.f32 %v156, %v59
    %v161 = vmul.f32 %v159, %v59
    %v162 = vsub.f32 %v46, %v160
    %v163 = vsub.f32 %v47, %v161
    %v164 = vmul.f32 %v162, %v162
    %v165 = vmul.f32 %v163, %v163
    %v166 = vsel %vm52, %v164, 0.0
    %167 = vadd.xlane.f32.xlu0 %v166
    %v168 = vpop.xlane.xlu0 %167
    %v169 = vsel %vm52, %v165, 0.0
    %170 = vadd.xlane.f32.xlu0 %v169
    %v171 = vpop.xlane.xlu0 %170
    %v172 = vmul.f32 %v168, 0.032258064
    %v173 = vmul.f32 %v171, 0.032258064
    %v174 = vrsqrt.pop %v172
    %v175 = vmul.f32 %v172, %v174
    %vm176 = vcmp.eq.f32.partialorder %v172, inf
    %v177 = vsel %vm176, %v172, %v175
    %vm178 = vcmp.eq.f32.partialorder %v172, 0.0
    %v179 = vand.u32 %v172, 2147483648
    %v180 = vsel %vm178, %v179, %v177
    %v181 = vrsqrt.pop %v173
    %v182 = vmul.f32 %v173, %v181
    %vm183 = vcmp.eq.f32.partialorder %v173, inf
    %v184 = vsel %vm183, %v173, %v182
    %vm185 = vcmp.eq.f32.partialorder %v173, 0.0
    %v186 = vand.u32 %v173, 2147483648
    %v187 = vsel %vm185, %v186, %v184
    %v188 = vadd.f32 %v180, 1e-06
    %v189 = vadd.f32 %v187, 1e-06
    %v190 = vrcp.pop %v188
    %v191 = vrcp.pop %v189
    %v192 = vmul.f32 %v96, %v190
    %v193 = vmul.f32 %v96, %v191
    %v194 = vmul.f32 %v162, %v192
    %v195 = vmul.f32 %v163, %v193
    %v196 = vadd.f32 %v194, %v106
    %v197 = vadd.f32 %v195, %v106
    %v199 = vsel %vm52, %v108, 0
    %v202 = vsel %vm52, %v109, 0
    %v205 = vsel %vm52, %v152, 0
    %v208 = vsel %vm52, %v153, 0
    %210 = vmatprep.subr.mxu0 0.0
    %211 = vmatpush1.xpose.msra.mxu0 %v205
    %212 = vmatprep.subr.mxu0 0.0
    %213 = vmatpush1.xpose.msra.mxu0 %v208
    %214 = vmatprep.subr.mxu0 0.0
    %215 = vmatpush1.xpose.msra.mxu0 0.0
    %216 = vmatprep.subr.mxu0 0.0
    %217 = vmatpush1.xpose.msra.mxu0 0.0
    %218 = vmatprep.subr.mxu0 0.0
    %219 = vmatpush1.xpose.msra.mxu0 0.0
    %220 = vmatprep.subr.mxu0 0.0
    %221 = vmatpush1.xpose.msra.mxu0 0.0
    %222 = vmatprep.subr.mxu0 0.0
    %223 = vmatpush1.xpose.msra.mxu0 0.0
    %224 = vmatprep.subr.mxu0 0.0
    %225 = vmatpush1.xpose.msra.mxu0 0.0
    %226 = vmatprep.subr.mxu0 0.0
    %227 = vmatpush1.xpose.msra.mxu0 0.0
    %228 = vmatprep.subr.mxu0 0.0
    %229 = vmatpush1.xpose.msra.mxu0 0.0
    %230 = vmatprep.subr.mxu0 0.0
    %231 = vmatpush1.xpose.msra.mxu0 0.0
    %232 = vmatprep.subr.mxu0 0.0
    %233 = vmatpush1.xpose.msra.mxu0 0.0
    %234 = vmatprep.subr.mxu0 0.0
    %235 = vmatpush1.xpose.msra.mxu0 0.0
    %236 = vmatprep.subr.mxu0 0.0
    %237 = vmatpush1.xpose.msra.mxu0 0.0
    %238 = vmatprep.subr.mxu0 0.0
    %239 = vmatpush1.xpose.msra.mxu0 0.0
    %240 = vmatprep.subr.mxu0 0.0
    %241 = vmatpush1.xpose.msra.mxu0 0.0
    %242 = vmatprep.subr.mxu0 0.0
    %243 = vmatpush1.xpose.msra.mxu0 0.0
    %244 = vmatprep.subr.mxu0 0.0
    %245 = vmatpush1.xpose.msra.mxu0 0.0
    %246 = vmatprep.subr.mxu0 0.0
    %247 = vmatpush1.xpose.msra.mxu0 0.0
    %248 = vmatprep.subr.mxu0 0.0
    %249 = vmatpush1.xpose.msra.mxu0 0.0
    %250 = vmatprep.subr.mxu0 0.0
    %251 = vmatpush1.xpose.msra.mxu0 0.0
    %252 = vmatprep.subr.mxu0 0.0
    %253 = vmatpush1.xpose.msra.mxu0 0.0
    %254 = vmatprep.subr.mxu0 0.0
    %255 = vmatpush1.xpose.msra.mxu0 0.0
    %256 = vmatprep.subr.mxu0 0.0
    %257 = vmatpush1.xpose.msra.mxu0 0.0
    %258 = vmatprep.subr.mxu0 0.0
    %259 = vmatpush1.xpose.msra.mxu0 0.0
    %260 = vmatprep.subr.mxu0 0.0
    %261 = vmatpush1.xpose.msra.mxu0 0.0
    %262 = vmatprep.subr.mxu0 0.0
    %263 = vmatpush1.xpose.msra.mxu0 0.0
    %264 = vmatprep.subr.mxu0 0.0
    %265 = vmatpush1.xpose.msra.mxu0 0.0
    %266 = vmatprep.subr.mxu0 0.0
    %267 = vmatpush1.xpose.msra.mxu0 0.0
    %268 = vmatprep.subr.mxu0 0.0
    %269 = vmatpush1.xpose.msra.mxu0 0.0
    %270 = vmatprep.subr.mxu0 0.0
    %271 = vmatpush1.xpose.msra.mxu0 0.0
    %272 = vmatprep.subr.mxu0 0.0
    %273 = vmatpush1.xpose.msra.mxu0 0.0
    %274 = vmatprep.mubr.f32.mxu0 0.0
    %275 = vmatmul.mubr.f32.gmra.mrb[0].mxu0 %v199
    %v276 = vpop.f32.mrb[0].mxu0
    %v277 = vadd.f32 0.0, %v276
    %v278 = vpop.f32.mrb[0].mxu0
    %279 = vmatprep.mubr.f32.mxu0 0.0
    %280 = vmatmul.mubr.f32.gmra.mrb[0].mxu0 %v202
    %v281 = vpop.f32.mrb[0].mxu0
    %v282 = vadd.f32 0.0, %v281
    %v283 = vpop.f32.mrb[0].mxu0
    %284 = vdwg.mxu0
    %v285 = vmul.f32 %v277, 0.17677669
    %v286 = vmul.f32 %v282, 0.17677669
    %v287 = vld [vmem:[%s3] sm:$0xff]
    %v288 = vld [vmem:[%s3 + $0x8] sm:$0xff]
    %v289 = vadd.f32 %v285, %v287
    %v290 = vadd.f32 %v286, %v288
    %vm291 = vcmask 130048
    %v292 = vsel %vm291, %v289, -inf
    %293 = vmax.xlane.f32.xlu0 %v292
    %v294 = vpop.xlane.xlu0 %293
    %v295 = vsel %vm291, %v290, -inf
    %296 = vmax.xlane.f32.xlu0 %v295
    %v297 = vpop.xlane.xlu0 %296
    %v298 = vsub.f32 %v289, %v294
    %v299 = vsub.f32 %v290, %v297
    %v300 = vmul.f32 %v298, 1.442695
    %v301 = vpow.pop %v300
    %v302 = vmul.f32 %v299, 1.442695
    %v303 = vpow.pop %v302
    %v304 = vsel %vm291, %v301, 0.0
    %305 = vadd.xlane.f32.xlu0 %v304
    %v306 = vpop.xlane.xlu0 %305
    %v307 = vsel %vm291, %v303, 0.0
    %308 = vadd.xlane.f32.xlu0 %v307
    %v309 = vpop.xlane.xlu0 %308
    %v310 = vrcp.pop %v306
    %v311 = vrcp.pop %v309
    %v312 = vmul.f32 %v301, %v310
    %v313 = vmul.f32 %v303, %v311
    %v315 = vsel %vm291, %v312, 0
    %v318 = vsel %vm291, %v313, 0
    %320 = vmatprep.subr.mxu0 0.0
    %321 = vmatpush1.msra.mxu0 %v196
    %322 = vmatprep.subr.mxu0 0.0
    %323 = vmatpush1.msra.mxu0 %v197
    %324 = vmatprep.subr.mxu0 0.0
    %325 = vmatpush1.msra.mxu0 0.0
    %326 = vmatprep.subr.mxu0 0.0
    %327 = vmatpush1.msra.mxu0 0.0
    %328 = vmatprep.subr.mxu0 0.0
    %329 = vmatpush1.msra.mxu0 0.0
    %330 = vmatprep.subr.mxu0 0.0
    %331 = vmatpush1.msra.mxu0 0.0
    %332 = vmatprep.subr.mxu0 0.0
    %333 = vmatpush1.msra.mxu0 0.0
    %334 = vmatprep.subr.mxu0 0.0
    %335 = vmatpush1.msra.mxu0 0.0
    %336 = vmatprep.subr.mxu0 0.0
    %337 = vmatpush1.msra.mxu0 0.0
    %338 = vmatprep.subr.mxu0 0.0
    %339 = vmatpush1.msra.mxu0 0.0
    %340 = vmatprep.subr.mxu0 0.0
    %341 = vmatpush1.msra.mxu0 0.0
    %342 = vmatprep.subr.mxu0 0.0
    %343 = vmatpush1.msra.mxu0 0.0
    %344 = vmatprep.subr.mxu0 0.0
    %345 = vmatpush1.msra.mxu0 0.0
    %346 = vmatprep.subr.mxu0 0.0
    %347 = vmatpush1.msra.mxu0 0.0
    %348 = vmatprep.subr.mxu0 0.0
    %349 = vmatpush1.msra.mxu0 0.0
    %350 = vmatprep.subr.mxu0 0.0
    %351 = vmatpush1.msra.mxu0 0.0
    %352 = vmatprep.subr.mxu0 0.0
    %353 = vmatpush1.msra.mxu0 0.0
    %354 = vmatprep.subr.mxu0 0.0
    %355 = vmatpush1.msra.mxu0 0.0
    %356 = vmatprep.subr.mxu0 0.0
    %357 = vmatpush1.msra.mxu0 0.0
    %358 = vmatprep.subr.mxu0 0.0
    %359 = vmatpush1.msra.mxu0 0.0
    %360 = vmatprep.subr.mxu0 0.0
    %361 = vmatpush1.msra.mxu0 0.0
    %362 = vmatprep.subr.mxu0 0.0
    %363 = vmatpush1.msra.mxu0 0.0
    %364 = vmatprep.subr.mxu0 0.0
    %365 = vmatpush1.msra.mxu0 0.0
    %366 = vmatprep.subr.mxu0 0.0
    %367 = vmatpush1.msra.mxu0 0.0
    %368 = vmatprep.subr.mxu0 0.0
    %369 = vmatpush1.msra.mxu0 0.0
    %370 = vmatprep.subr.mxu0 0.0
    %371 = vmatpush1.msra.mxu0 0.0
    %372 = vmatprep.subr.mxu0 0.0
    %373 = vmatpush1.msra.mxu0 0.0
    %374 = vmatprep.subr.mxu0 0.0
    %375 = vmatpush1.msra.mxu0 0.0
    %376 = vmatprep.subr.mxu0 0.0
    %377 = vmatpush1.msra.mxu0 0.0
    %378 = vmatprep.subr.mxu0 0.0
    %379 = vmatpush1.msra.mxu0 0.0
    %380 = vmatprep.subr.mxu0 0.0
    %381 = vmatpush1.msra.mxu0 0.0
    %382 = vmatprep.subr.mxu0 0.0
    %383 = vmatpush1.msra.mxu0 0.0
    %384 = vmatprep.mubr.f32.mxu0 0.0
    %385 = vmatmul.mubr.f32.gmra.mrb[0].mxu0 %v315
    %v386 = vpop.f32.mrb[0].mxu0
    %v387 = vadd.f32 0.0, %v386
    %v388 = vpop.f32.mrb[0].mxu0
    %389 = vmatprep.mubr.f32.mxu0 0.0
    %390 = vmatmul.mubr.f32.gmra.mrb[0].mxu0 %v318
    %v391 = vpop.f32.mrb[0].mxu0
    %v392 = vadd.f32 0.0, %v391
    %v393 = vpop.f32.mrb[0].mxu0
    %394 = vdwg.mxu0
    %v395 = vadd.f32 %v42, %v387
    %v396 = vadd.f32 %v43, %v392
    %v397 = vsel %vm52, %v395, 0.0
    %398 = vadd.xlane.f32.xlu0 %v397
    %v399 = vpop.xlane.xlu0 %398
    %v400 = vsel %vm52, %v396, 0.0
    %401 = vadd.xlane.f32.xlu0 %v400
    %v402 = vpop.xlane.xlu0 %401
    %v403 = vmul.f32 %v399, %v59
    %v404 = vmul.f32 %v402, %v59
    %v405 = vsub.f32 %v395, %v403
    %v406 = vsub.f32 %v396, %v404
    %v407 = vmul.f32 %v405, %v405
    %v408 = vmul.f32 %v406, %v406
    %v409 = vsel %vm52, %v407, 0.0
    %410 = vadd.xlane.f32.xlu0 %v409
    %v411 = vpop.xlane.xlu0 %410
    %v412 = vsel %vm52, %v408, 0.0
    %413 = vadd.xlane.f32.xlu0 %v412
    %v414 = vpop.xlane.xlu0 %413
    %v415 = vmul.f32 %v411, 0.032258064
    %v416 = vmul.f32 %v414, 0.032258064
    %v417 = vrsqrt.pop %v415
    %v418 = vmul.f32 %v415, %v417
    %vm419 = vcmp.eq.f32.partialorder %v415, inf
    %v420 = vsel %vm419, %v415, %v418
    %vm421 = vcmp.eq.f32.partialorder %v415, 0.0
    %v422 = vand.u32 %v415, 2147483648
    %v423 = vsel %vm421, %v422, %v420
    %v424 = vrsqrt.pop %v416
    %v425 = vmul.f32 %v416, %v424
    %vm426 = vcmp.eq.f32.partialorder %v416, inf
    %v427 = vsel %vm426, %v416, %v425
    %vm428 = vcmp.eq.f32.partialorder %v416, 0.0
    %v429 = vand.u32 %v416, 2147483648
    %v430 = vsel %vm428, %v429, %v427
    %v431 = vadd.f32 %v423, 1e-06
    %v432 = vadd.f32 %v430, 1e-06
    %v433 = vrcp.pop %v431
    %v434 = vrcp.pop %v432
    %v436 = vlaneseq
    %v437 = vshrl.u32 %v436, 7
    %v438 = vsub.s32 0, %v437
    %v439 = vrot.slane %v50, %v438
    %v441 = vmul.f32 %v439, %v433
    %v442 = vmul.f32 %v439, %v434
    %v443 = vmul.f32 %v405, %v441
    %v444 = vmul.f32 %v406, %v442
    %v446 = vlaneseq
    %v447 = vshrl.u32 %v446, 7
    %v448 = vsub.s32 0, %v447
    %v449 = vrot.slane %v51, %v448
    %v451 = vadd.f32 %v443, %v449
    %v452 = vadd.f32 %v444, %v449
    %v453 = vld [vmem:[%s8] sm:$0xff]
    %v454 = vld [vmem:[%s8 + $0x8] sm:$0xff]
    %v455 = vld [vmem:[%s8 + $0x10] sm:$0xff]
    %v456 = vld [vmem:[%s8 + $0x18] sm:$0xff]
    %v457 = vld [vmem:[%s9] sm:$0x1]
    %v459 = vlaneseq
    %v460 = vshrl.u32 %v459, 7
    %v461 = vsub.s32 0, %v460
    %v462 = vrot.slane %v457, %v461
    %v465 = vsel %vm52, %v451, 0
    %v468 = vsel %vm52, %v452, 0
    %470 = vmatprep.subr.mxu0 0.0
    %471 = vmatpush1.msra.mxu0 %v453
    %472 = vmatprep.subr.mxu0 0.0
    %473 = vmatpush1.msra.mxu0 %v454
    %474 = vmatprep.subr.mxu0 0.0
    %475 = vmatpush1.msra.mxu0 %v455
    %476 = vmatprep.subr.mxu0 0.0
    %477 = vmatpush1.msra.mxu0 %v456
    %478 = vmatprep.subr.mxu0 0.0
    %479 = vmatpush1.msra.mxu0 0.0
    %480 = vmatprep.subr.mxu0 0.0
    %481 = vmatpush1.msra.mxu0 0.0
    %482 = vmatprep.subr.mxu0 0.0
    %483 = vmatpush1.msra.mxu0 0.0
    %484 = vmatprep.subr.mxu0 0.0
    %485 = vmatpush1.msra.mxu0 0.0
    %486 = vmatprep.subr.mxu0 0.0
    %487 = vmatpush1.msra.mxu0 0.0
    %488 = vmatprep.subr.mxu0 0.0
    %489 = vmatpush1.msra.mxu0 0.0
    %490 = vmatprep.subr.mxu0 0.0
    %491 = vmatpush1.msra.mxu0 0.0
    %492 = vmatprep.subr.mxu0 0.0
    %493 = vmatpush1.msra.mxu0 0.0
    %494 = vmatprep.subr.mxu0 0.0
    %495 = vmatpush1.msra.mxu0 0.0
    %496 = vmatprep.subr.mxu0 0.0
    %497 = vmatpush1.msra.mxu0 0.0
    %498 = vmatprep.subr.mxu0 0.0
    %499 = vmatpush1.msra.mxu0 0.0
    %500 = vmatprep.subr.mxu0 0.0
    %501 = vmatpush1.msra.mxu0 0.0
    %502 = vmatprep.subr.mxu0 0.0
    %503 = vmatpush1.msra.mxu0 0.0
    %504 = vmatprep.subr.mxu0 0.0
    %505 = vmatpush1.msra.mxu0 0.0
    %506 = vmatprep.subr.mxu0 0.0
    %507 = vmatpush1.msra.mxu0 0.0
    %508 = vmatprep.subr.mxu0 0.0
    %509 = vmatpush1.msra.mxu0 0.0
    %510 = vmatprep.subr.mxu0 0.0
    %511 = vmatpush1.msra.mxu0 0.0
    %512 = vmatprep.subr.mxu0 0.0
    %513 = vmatpush1.msra.mxu0 0.0
    %514 = vmatprep.subr.mxu0 0.0
    %515 = vmatpush1.msra.mxu0 0.0
    %516 = vmatprep.subr.mxu0 0.0
    %517 = vmatpush1.msra.mxu0 0.0
    %518 = vmatprep.subr.mxu0 0.0
    %519 = vmatpush1.msra.mxu0 0.0
    %520 = vmatprep.subr.mxu0 0.0
    %521 = vmatpush1.msra.mxu0 0.0
    %522 = vmatprep.subr.mxu0 0.0
    %523 = vmatpush1.msra.mxu0 0.0
    %524 = vmatprep.subr.mxu0 0.0
    %525 = vmatpush1.msra.mxu0 0.0
    %526 = vmatprep.subr.mxu0 0.0
    %527 = vmatpush1.msra.mxu0 0.0
    %528 = vmatprep.subr.mxu0 0.0
    %529 = vmatpush1.msra.mxu0 0.0
    %530 = vmatprep.subr.mxu0 0.0
    %531 = vmatpush1.msra.mxu0 0.0
    %532 = vmatprep.subr.mxu0 0.0
    %533 = vmatpush1.msra.mxu0 0.0
    %534 = vmatprep.mubr.f32.mxu0 0.0
    %535 = vmatmul.mubr.f32.gmra.mrb[0].mxu0 %v465
    %v536 = vpop.f32.mrb[0].mxu0
    %v537 = vadd.f32 %v462, %v536
    %v538 = vpop.f32.mrb[0].mxu0
    %539 = vmatprep.mubr.f32.mxu0 0.0
    %540 = vmatmul.mubr.f32.gmra.mrb[0].mxu0 %v468
    %v541 = vpop.f32.mrb[0].mxu0
    %v542 = vadd.f32 %v462, %v541
    %v543 = vpop.f32.mrb[0].mxu0
    %544 = vdwg.mxu0
    %v545 = vmax.f32 %v537, 0.0
    %v546 = vmax.f32 %v542, 0.0
    %v547 = vld [vmem:[%s10] sm:$0xff]
    %v548 = vld [vmem:[%s10 + $0x8] sm:$0xff]
    %v549 = vld [vmem:[%s10 + $0x10] sm:$0xff]
    %v550 = vld [vmem:[%s10 + $0x18] sm:$0xff]
    %v551 = vld [vmem:[%s10 + $0x20] sm:$0xff]
    %v552 = vld [vmem:[%s10 + $0x28] sm:$0xff]
    %v553 = vld [vmem:[%s10 + $0x30] sm:$0xff]
    %v554 = vld [vmem:[%s10 + $0x38] sm:$0xff]
    %v555 = vld [vmem:[%s10 + $0x40] sm:$0xff]
    %v556 = vld [vmem:[%s10 + $0x48] sm:$0xff]
    %v557 = vld [vmem:[%s10 + $0x50] sm:$0xff]
    %v558 = vld [vmem:[%s10 + $0x58] sm:$0xff]
    %v559 = vld [vmem:[%s10 + $0x60] sm:$0xff]
    %v560 = vld [vmem:[%s10 + $0x68] sm:$0xff]
    %v561 = vld [vmem:[%s10 + $0x70] sm:$0xff]
    %v562 = vld [vmem:[%s10 + $0x78] sm:$0xff]
    %v563 = vld [vmem:[%s11] sm:$0x1]
    %v565 = vlaneseq
    %v566 = vshrl.u32 %v565, 7
    %v567 = vsub.s32 0, %v566
    %v568 = vrot.slane %v563, %v567
    %570 = vmatprep.subr.mxu0 0.0
    %571 = vmatpush1.msra.mxu0 %v547
    %572 = vmatprep.subr.mxu0 0.0
    %573 = vmatpush1.msra.mxu0 %v548
    %574 = vmatprep.subr.mxu0 0.0
    %575 = vmatpush1.msra.mxu0 %v549
    %576 = vmatprep.subr.mxu0 0.0
    %577 = vmatpush1.msra.mxu0 %v550
    %578 = vmatprep.subr.mxu0 0.0
    %579 = vmatpush1.msra.mxu0 %v551
    %580 = vmatprep.subr.mxu0 0.0
    %581 = vmatpush1.msra.mxu0 %v552
    %582 = vmatprep.subr.mxu0 0.0
    %583 = vmatpush1.msra.mxu0 %v553
    %584 = vmatprep.subr.mxu0 0.0
    %585 = vmatpush1.msra.mxu0 %v554
    %586 = vmatprep.subr.mxu0 0.0
    %587 = vmatpush1.msra.mxu0 %v555
    %588 = vmatprep.subr.mxu0 0.0
    %589 = vmatpush1.msra.mxu0 %v556
    %590 = vmatprep.subr.mxu0 0.0
    %591 = vmatpush1.msra.mxu0 %v557
    %592 = vmatprep.subr.mxu0 0.0
    %593 = vmatpush1.msra.mxu0 %v558
    %594 = vmatprep.subr.mxu0 0.0
    %595 = vmatpush1.msra.mxu0 %v559
    %596 = vmatprep.subr.mxu0 0.0
    %597 = vmatpush1.msra.mxu0 %v560
    %598 = vmatprep.subr.mxu0 0.0
    %599 = vmatpush1.msra.mxu0 %v561
    %600 = vmatprep.subr.mxu0 0.0
    %601 = vmatpush1.msra.mxu0 %v562
    %602 = vmatprep.subr.mxu0 0.0
    %603 = vmatpush1.msra.mxu0 0.0
    %604 = vmatprep.subr.mxu0 0.0
    %605 = vmatpush1.msra.mxu0 0.0
    %606 = vmatprep.subr.mxu0 0.0
    %607 = vmatpush1.msra.mxu0 0.0
    %608 = vmatprep.subr.mxu0 0.0
    %609 = vmatpush1.msra.mxu0 0.0
    %610 = vmatprep.subr.mxu0 0.0
    %611 = vmatpush1.msra.mxu0 0.0
    %612 = vmatprep.subr.mxu0 0.0
    %613 = vmatpush1.msra.mxu0 0.0
    %614 = vmatprep.subr.mxu0 0.0
    %615 = vmatpush1.msra.mxu0 0.0
    %616 = vmatprep.subr.mxu0 0.0
    %617 = vmatpush1.msra.mxu0 0.0
    %618 = vmatprep.subr.mxu0 0.0
    %619 = vmatpush1.msra.mxu0 0.0
    %620 = vmatprep.subr.mxu0 0.0
    %621 = vmatpush1.msra.mxu0 0.0
    %622 = vmatprep.subr.mxu0 0.0
    %623 = vmatpush1.msra.mxu0 0.0
    %624 = vmatprep.subr.mxu0 0.0
    %625 = vmatpush1.msra.mxu0 0.0
    %626 = vmatprep.subr.mxu0 0.0
    %627 = vmatpush1.msra.mxu0 0.0
    %628 = vmatprep.subr.mxu0 0.0
    %629 = vmatpush1.msra.mxu0 0.0
    %630 = vmatprep.subr.mxu0 0.0
    %631 = vmatpush1.msra.mxu0 0.0
    %632 = vmatprep.subr.mxu0 0.0
    %633 = vmatpush1.msra.mxu0 0.0
    %634 = vmatprep.mubr.f32.mxu0 0.0
    %635 = vmatmul.mubr.f32.gmra.mrb[0].mxu0 %v545
    %v636 = vpop.f32.mrb[0].mxu0
    %v637 = vadd.f32 %v568, %v636
    %v638 = vpop.f32.mrb[0].mxu0
    %639 = vmatprep.mubr.f32.mxu0 0.0
    %640 = vmatmul.mubr.f32.gmra.mrb[0].mxu0 %v546
    %v641 = vpop.f32.mrb[0].mxu0
    %v642 = vadd.f32 %v568, %v641
    %v643 = vpop.f32.mrb[0].mxu0
    %644 = vdwg.mxu0
    %v645 = vadd.f32 %v395, %v637
    %v646 = vadd.f32 %v396, %v642
    %647 = vst.msk [vmem:[#allocation2] sm:$0xff] %vm52, %v645
    %648 = vst.msk [vmem:[#allocation2 + $0x8] sm:$0xff] %vm52, %v646
    // Predicated region
    $region50: #{tpu_custom_call.1} parent=1 // pred_check
      _
    $region51: #{tpu_custom_call.1} parent=1 // pred_check_branch
      %650 = sbr.rel (0) target = $region53
    $region52: #{tpu_custom_call.1} parent=1 // pred_region
      %s652 = ssub.s32 256, 256
      %653 = vsyncadd [#allocation3], %s652
      %s654 = sshll.u32 [#allocation2], 4
      %s655 = int_to_ptr.vmem [resolvable:$true] %s654
      %660 = dma.vmem_to_hbm [thread:$0]  %s655, 256, %s12, [#allocation3], 128, 128, 8
    $region53: #{tpu_custom_call.1} parent=1 // pred_fallthru
      _
    // Predicated region
    $region54: #{tpu_custom_call.1} parent=1 // pred_check
      _
    $region55: #{tpu_custom_call.1} parent=1 // pred_check_branch
      %662 = sbr.rel (0) target = $region57
    $region56: #{tpu_custom_call.1} parent=1 // pred_region
      %663 = dma.done [#allocation3], 256
    $region57: #{tpu_custom_call.1} parent=1 // pred_fallthru
      _
    %664 = vsyncpa [#allocation3], 1

</llo_original>
